<compile_context>
chip_gen: v7x
topology: tpu7x:2x2x1
jax: 0.10.0
libtpu: 0.0.40
codegen_flags: <defaults>
</compile_context>

<pallas_src>
import functools

import jax
import jax.numpy as jnp
from jax.experimental import pallas as pl
from jax.experimental.pallas import tpu as pltpu


def _round_up(a, b):
    return (a + b - 1) // b * b


def _vmem_limit_bytes():
    """Per-core VMEM limit: physical capacity minus headroom (v7x = 64 MiB)."""
    cap = 64 * 1024 * 1024  # conservative fallback (v7x per-TensorCore size)
    try:
        info = pltpu.get_tpu_info()
        cap = int(getattr(info, "vmem_capacity_bytes", cap))
    except Exception:
        pass
    return max(cap - 16 * 1024 * 1024, 32 * 1024 * 1024)


def _block_vmem_bytes(tm, th, d_in, d_out, x_bytes, w_bytes, out_bytes, need_acc):
    """Rough VMEM footprint of one block set (inputs/outputs double-buffered)."""
    b = 2 * tm * d_in * x_bytes           # x tiles
    b += 2 * d_in * th * w_bytes          # W1 tiles
    b += 2 * th * d_out * w_bytes         # W2 tiles
    b += 2 * tm * d_out * out_bytes       # out tiles
    b += 2 * (th + d_out) * 4             # biases (f32)
    if need_acc:
        b += tm * d_out * 4               # f32 accumulator scratch
    return b


def _pick_th(H, th_req, d_in, d_out, x_bytes, w_bytes, out_bytes, tm, budget, need_acc):
    """Largest multiple-of-128 divisor of H that is <= th_req and fits the budget."""
    divs = [d for d in range(128, H + 1, 128) if H % d == 0]
    if not divs:
        # Lane constraint (last dim of the W1 block) forces full-H blocks.
        return H

    def fits(d):
        return _block_vmem_bytes(tm, d, d_in, d_out, x_bytes, w_bytes,
                                 out_bytes, need_acc) <= budget

    ok = [d for d in divs if d <= th_req and fits(d)]
    if ok:
        return max(ok)
    ok = [d for d in divs if fits(d)]
    if ok:
        return max(ok)
    return min(divs)


# ------------------------------- kernels -----------------------------------


def _mlp_kernel_resident(x_ref, w1_ref, b1_ref, w2_ref, b2_ref, o_ref, *,
                         approximate):
    """Whole hidden dim per step (weights VMEM-resident across the grid)."""
    x = x_ref[...].astype(w1_ref.dtype)
    hid = jnp.dot(x, w1_ref[...], preferred_element_type=jnp.float32) + b1_ref[...]
    hid = jax.nn.gelu(hid, approximate=approximate)
    out = jnp.dot(hid.astype(w2_ref.dtype), w2_ref[...],
                  preferred_element_type=jnp.float32) + b2_ref[...]
    o_ref[...] = out.astype(o_ref.dtype)


def _mlp_kernel_htiled(x_ref, w1_ref, b1_ref, w2_ref, b2_ref, o_ref, *scratch,
                       approximate):
    """Hidden dim tiled on the last ("arbitrary") grid axis; f32 accumulation."""
    # For f32 outputs the output block itself (resident across the h axis) is
    # the accumulator; otherwise a dedicated f32 VMEM scratch is used.
    acc_ref = scratch[0] if scratch else o_ref
    h = pl.program_id(1)

    @pl.when(h == 0)
    def _():
        acc_ref[...] = jnp.zeros_like(acc_ref)

    x = x_ref[...].astype(w1_ref.dtype)
    hid = jnp.dot(x, w1_ref[...], preferred_element_type=jnp.float32) + b1_ref[...]
    hid = jax.nn.gelu(hid, approximate=approximate)
    acc_ref[...] += jnp.dot(hid.astype(w2_ref.dtype), w2_ref[...],
                            preferred_element_type=jnp.float32)

    @pl.when(h == pl.num_programs(1) - 1)
    def _():
        o_ref[...] = (acc_ref[...] + b2_ref[...]).astype(o_ref.dtype)


# ------------------------------- wrapper ------------------------------------


def mlp_pallas(x, w1, b1, w2, b2, *, tm=512, th=1024,
               compute_dtype=jnp.bfloat16, gelu_approximate=None,
               force_h_tiling=False, vmem_limit_bytes=None):
    """ViT Mlp forward.

    x:  (B, N, D_in) activations (read in their stored dtype; cast in-kernel).
    w1: (D_in, H), b1: (H,), w2: (H, D_out), b2: (D_out,).
    compute_dtype: dtype fed to the MXU (bf16 default, f32 accumulation).
                   For serving, pre-cast the weights to this dtype once.
    gelu_approximate: None -> tanh (EUP) when compute_dtype is 16-bit, exact
                   erf otherwise.  Pass False to force nn.GELU() exact erf.
    """
    B, N, D_in = x.shape
    H = w1.shape[1]
    D_out = w2.shape[1]
    out_dtype = x.dtype
    M = B * N

    cdt = jnp.dtype(compute_dtype)
    x_bytes = jnp.dtype(x.dtype).itemsize
    w_bytes = cdt.itemsize
    out_bytes = jnp.dtype(out_dtype).itemsize

    if gelu_approximate is None:
        gelu_approximate = (w_bytes == 2)

    if vmem_limit_bytes is None:
        vmem_limit_bytes = _vmem_limit_bytes()
    vmem_budget = int(vmem_limit_bytes * 0.8)

    # Row tile: sublane aligned, never larger than (rounded-up) M.
    sub = 16 if min(x_bytes, out_bytes) == 2 else 8
    tm_eff = _round_up(min(tm, _round_up(M, sub)), sub)

    # Hidden tile: keep weights fully resident (single h step) when they fit.
    need_acc_if_tiled = jnp.dtype(out_dtype) != jnp.dtype(jnp.float32)
    weights_fit = _block_vmem_bytes(tm_eff, H, D_in, D_out, x_bytes, w_bytes,
                                    out_bytes, need_acc=False) <= vmem_budget
    if weights_fit and not force_h_tiling:
        th_eff = H
    else:
        th_eff = _pick_th(H, th, D_in, D_out, x_bytes, w_bytes, out_bytes,
                          tm_eff, vmem_budget, need_acc_if_tiled)
    num_h = H // th_eff

    # Cast weights only if not already in the compute dtype (no-op when the
    # caller pre-casts them once outside the serving loop).
    w1c = w1 if w1.dtype == cdt else w1.astype(cdt)
    w2c = w2 if w2.dtype == cdt else w2.astype(cdt)
    b1r = b1.astype(jnp.float32).reshape(1, H)
    b2r = b2.astype(jnp.float32).reshape(1, D_out)

    x2 = x.reshape(M, D_in)                 # free reshape; no pad / cast pass
    grid_m = pl.cdiv(M, tm_eff)             # partial last block is masked
    out_shape = jax.ShapeDtypeStruct((M, D_out), out_dtype)

    if num_h == 1:
        kernel = functools.partial(_mlp_kernel_resident,
                                   approximate=gelu_approximate)
        grid_spec = pltpu.PrefetchScalarGridSpec(
            num_scalar_prefetch=0,
            grid=(grid_m,),
            in_specs=[
                pl.BlockSpec((tm_eff, D_in), lambda i: (i, 0)),   # x rows
                pl.BlockSpec((D_in, H), lambda i: (0, 0)),        # W1 (resident)
                pl.BlockSpec((1, H), lambda i: (0, 0)),           # b1
                pl.BlockSpec((H, D_out), lambda i: (0, 0)),       # W2 (resident)
                pl.BlockSpec((1, D_out), lambda i: (0, 0)),       # b2
            ],
            out_specs=pl.BlockSpec((tm_eff, D_out), lambda i: (i, 0)),
            scratch_shapes=[],
        )
        dim_sem = ("parallel",)
    else:
        kernel = functools.partial(_mlp_kernel_htiled,
                                   approximate=gelu_approximate)
        scratch = ([] if not need_acc_if_tiled
                   else [pltpu.VMEM((tm_eff, D_out), jnp.float32)])
        grid_spec = pltpu.PrefetchScalarGridSpec(
            num_scalar_prefetch=0,
            grid=(grid_m, num_h),
            in_specs=[
                pl.BlockSpec((tm_eff, D_in), lambda i, h: (i, 0)),   # x rows
                pl.BlockSpec((D_in, th_eff), lambda i, h: (0, h)),   # W1 tile
                pl.BlockSpec((1, th_eff), lambda i, h: (0, h)),      # b1 tile
                pl.BlockSpec((th_eff, D_out), lambda i, h: (h, 0)),  # W2 tile
                pl.BlockSpec((1, D_out), lambda i, h: (0, 0)),       # b2
            ],
            out_specs=pl.BlockSpec((tm_eff, D_out), lambda i, h: (i, 0)),
            scratch_shapes=scratch,
        )
        dim_sem = ("parallel", "arbitrary")

    out2 = pl.pallas_call(
        kernel,
        out_shape=out_shape,
        grid_spec=grid_spec,
        compiler_params=pltpu.CompilerParams(
            dimension_semantics=dim_sem,
            vmem_limit_bytes=int(vmem_limit_bytes),
        ),
    )(x2, w1c, b1r, w2c, b2r)

    return out2.reshape(B, N, D_out)


def init_mlp_params(key, in_features, hidden_features, out_features):
    """Deterministic nn.Linear-style (uniform) init; weights stored (in, out)."""
    k1, k2, k3, k4 = jax.random.split(key, 4)
    bound1 = 1.0 / (in_features ** 0.5)
    bound2 = 1.0 / (hidden_features ** 0.5)
    w1 = jax.random.uniform(k1, (in_features, hidden_features),
                            jnp.float32, -bound1, bound1)
    b1 = jax.random.uniform(k2, (hidden_features,), jnp.float32, -bound1, bound1)
    w2 = jax.random.uniform(k3, (hidden_features, out_features),
                            jnp.float32, -bound2, bound2)
    b2 = jax.random.uniform(k4, (out_features,), jnp.float32, -bound2, bound2)
    return w1, b1, w2, b2


if __name__ == "__main__":
    key = jax.random.PRNGKey(0)
    kx, kp = jax.random.split(key)

    B, N = 2, 8                     # batch, sequence length
    D_in, H, D_out = 32, 64, 32     # in_features, hidden_features, out_features

    x = jax.random.normal(kx, (B, N, D_in), jnp.float32)
    w1, b1, w2, b2 = init_mlp_params(kp, D_in, H, D_out)

    # Full-precision reference (exact-erf GELU, drop=0.0 -> identity).
    hp = jax.lax.Precision.HIGHEST
    ref = jax.nn.gelu(jnp.dot(x, w1, precision=hp) + b1, approximate=False)
    ref = jnp.dot(ref, w2, precision=hp) + b2

    # 1) Default path: bf16 MXU feed, weights pre-cast once (serving pattern),
    #    fully VMEM-resident weights (no hidden-dim tiling).
    w1b, w2b = w1.astype(jnp.bfloat16), w2.astype(jnp.bfloat16)
    y = mlp_pallas(x, w1b, b1, w2b, b2)
    jax.block_until_ready(y)
    assert y.shape == (B, N, D_out)
    assert jnp.allclose(y, ref, atol=3e-2, rtol=3e-2), \
        float(jnp.max(jnp.abs(y - ref)))

    # 2) Full-f32 path (exact-erf GELU) for tight numeric validation.
    y32 = mlp_pallas(x, w1, b1, w2, b2, compute_dtype=jnp.float32)
    jax.block_until_ready(y32)
    assert jnp.allclose(y32, ref, atol=1e-3, rtol=1e-3), \
        float(jnp.max(jnp.abs(y32 - ref)))

    # 3) Exercise the hidden-dim-tiled accumulator path (f32 out -> accumulate
    #    directly into the output block).
    H2 = 256
    w1t, b1t, w2t, b2t = init_mlp_params(jax.random.PRNGKey(1), D_in, H2, D_out)
    ref2 = jax.nn.gelu(jnp.dot(x, w1t, precision=hp) + b1t, approximate=False)
    ref2 = jnp.dot(ref2, w2t, precision=hp) + b2t
    y2 = mlp_pallas(x, w1t, b1t, w2t, b2t, th=128, force_h_tiling=True)
    jax.block_until_ready(y2)
    assert jnp.allclose(y2, ref2, atol=3e-2, rtol=3e-2), \
        float(jnp.max(jnp.abs(y2 - ref2)))

    # 4) bf16 activations / bf16 output -> exercises the f32 scratch path.
    xb = x.astype(jnp.bfloat16)
    y3 = mlp_pallas(xb, w1t, b1t, w2t, b2t, th=128, force_h_tiling=True)
    jax.block_until_ready(y3)
    assert y3.dtype == jnp.bfloat16
    assert jnp.allclose(y3.astype(jnp.float32), ref2, atol=6e-2, rtol=6e-2), \
        float(jnp.max(jnp.abs(y3.astype(jnp.float32) - ref2)))

    print("KERNEL_OK")
</pallas_src>

<mosaic_0001>
module attributes {stable_mosaic.version = 11 : i64} {
  func.func @_mlp_kernel_resident(%arg0: i32, %arg1: memref<16x32xf32, #tpu.memory_space<vmem>>, %arg2: memref<32x64xbf16, #tpu.memory_space<vmem>>, %arg3: memref<1x64xf32, #tpu.memory_space<vmem>>, %arg4: memref<64x32xbf16, #tpu.memory_space<vmem>>, %arg5: memref<1x32xf32, #tpu.memory_space<vmem>>, %arg6: memref<16x32xf32, #tpu.memory_space<vmem>>) attributes {dimension_semantics = [#tpu.dimension_semantics<parallel>], iteration_bounds = array<i64: 1>, scalar_prefetch = 0 : i64, scratch_operands = 0 : i64, tpu.core_type = #tpu.core_type<tc>, window_params = [{transform_indices = @transform_0, window_bounds = array<i64: 16, 32>}, {pipeline_mode = #tpu.pipeline_mode<synchronous>, transform_indices = @transform_1, window_bounds = array<i64: 32, 64>}, {pipeline_mode = #tpu.pipeline_mode<synchronous>, transform_indices = @transform_2, window_bounds = array<i64: 1, 64>}, {pipeline_mode = #tpu.pipeline_mode<synchronous>, transform_indices = @transform_3, window_bounds = array<i64: 64, 32>}, {pipeline_mode = #tpu.pipeline_mode<synchronous>, transform_indices = @transform_4, window_bounds = array<i64: 1, 32>}, {transform_indices = @transform_5, window_bounds = array<i64: 16, 32>}]} {
    %c0 = arith.constant 0 : index
    %c0_0 = arith.constant 0 : index
    %0 = vector.load %arg1[%c0, %c0_0] : memref<16x32xf32, #tpu.memory_space<vmem>>, vector<16x32xf32>
    %1 = arith.truncf %0 : vector<16x32xf32> to vector<16x32xbf16>
    %c0_1 = arith.constant 0 : index
    %c0_2 = arith.constant 0 : index
    %2 = vector.load %arg2[%c0_1, %c0_2] : memref<32x64xbf16, #tpu.memory_space<vmem>>, vector<32x64xbf16>
    %cst = arith.constant dense<0.000000e+00> : vector<16x64xf32>
    %3 = tpu.matmul %1, %2, %cst {dimension_numbers = #tpu.dot_dimension_numbers<[1], [0], [0], [1], [0, 0, 1, 1], [], []>} : vector<16x32xbf16>, vector<32x64xbf16>, vector<16x64xf32> -> vector<16x64xf32>
    %c0_3 = arith.constant 0 : index
    %c0_4 = arith.constant 0 : index
    %4 = vector.load %arg3[%c0_3, %c0_4] : memref<1x64xf32, #tpu.memory_space<vmem>>, vector<1x64xf32>
    %5 = vector.broadcast %4 : vector<1x64xf32> to vector<16x64xf32>
    %6 = arith.addf %3, %5 : vector<16x64xf32>
    %7 = arith.mulf %6, %6 : vector<16x64xf32>
    %8 = arith.mulf %6, %7 : vector<16x64xf32>
    %cst_5 = arith.constant 4.471500e-02 : f32
    %9 = vector.broadcast %cst_5 : f32 to vector<16x64xf32>
    %10 = arith.mulf %9, %8 : vector<16x64xf32>
    %11 = arith.addf %6, %10 : vector<16x64xf32>
    %cst_6 = arith.constant 0.797884583 : f32
    %12 = vector.broadcast %cst_6 : f32 to vector<16x64xf32>
    %13 = arith.mulf %12, %11 : vector<16x64xf32>
    %14 = math.tanh %13 : vector<16x64xf32>
    %cst_7 = arith.constant 1.000000e+00 : f32
    %15 = vector.broadcast %cst_7 : f32 to vector<16x64xf32>
    %16 = arith.addf %15, %14 : vector<16x64xf32>
    %cst_8 = arith.constant 5.000000e-01 : f32
    %17 = vector.broadcast %cst_8 : f32 to vector<16x64xf32>
    %18 = arith.mulf %17, %16 : vector<16x64xf32>
    %19 = arith.mulf %6, %18 : vector<16x64xf32>
    %20 = arith.truncf %19 : vector<16x64xf32> to vector<16x64xbf16>
    %c0_9 = arith.constant 0 : index
    %c0_10 = arith.constant 0 : index
    %21 = vector.load %arg4[%c0_9, %c0_10] : memref<64x32xbf16, #tpu.memory_space<vmem>>, vector<64x32xbf16>
    %cst_11 = arith.constant dense<0.000000e+00> : vector<16x32xf32>
    %22 = tpu.matmul %20, %21, %cst_11 {dimension_numbers = #tpu.dot_dimension_numbers<[1], [0], [0], [1], [0, 0, 1, 1], [], []>} : vector<16x64xbf16>, vector<64x32xbf16>, vector<16x32xf32> -> vector<16x32xf32>
    %c0_12 = arith.constant 0 : index
    %c0_13 = arith.constant 0 : index
    %23 = vector.load %arg5[%c0_12, %c0_13] : memref<1x32xf32, #tpu.memory_space<vmem>>, vector<1x32xf32>
    %24 = vector.broadcast %23 : vector<1x32xf32> to vector<16x32xf32>
    %25 = arith.addf %22, %24 : vector<16x32xf32>
    %c0_14 = arith.constant 0 : index
    %c0_15 = arith.constant 0 : index
    %26 = vector.load %arg6[%c0_14, %c0_15] : memref<16x32xf32, #tpu.memory_space<vmem>>, vector<16x32xf32>
    tpu.vector_store %arg6[%c0_14, %c0_15], %25 {strides = array<i32>} : memref<16x32xf32, #tpu.memory_space<vmem>>, vector<16x32xf32>,
    return
  }
  func.func @transform_0(%arg0: i32) -> (i32, i32) {
    %c0_i32 = arith.constant 0 : i32
    %c0_i32_0 = arith.constant 0 : i32
    return %arg0, %c0_i32 : i32, i32
  }
  func.func @transform_1(%arg0: i32) -> (i32, i32) {
    %c0_i32 = arith.constant 0 : i32
    %c0_i32_0 = arith.constant 0 : i32
    %c0_i32_1 = arith.constant 0 : i32
    return %c0_i32, %c0_i32_0 : i32, i32
  }
  func.func @transform_2(%arg0: i32) -> (i32, i32) {
    %c0_i32 = arith.constant 0 : i32
    %c0_i32_0 = arith.constant 0 : i32
    %c0_i32_1 = arith.constant 0 : i32
    return %c0_i32, %c0_i32_0 : i32, i32
  }
  func.func @transform_3(%arg0: i32) -> (i32, i32) {
    %c0_i32 = arith.constant 0 : i32
    %c0_i32_0 = arith.constant 0 : i32
    %c0_i32_1 = arith.constant 0 : i32
    return %c0_i32, %c0_i32_0 : i32, i32
  }
  func.func @transform_4(%arg0: i32) -> (i32, i32) {
    %c0_i32 = arith.constant 0 : i32
    %c0_i32_0 = arith.constant 0 : i32
    %c0_i32_1 = arith.constant 0 : i32
    return %c0_i32, %c0_i32_0 : i32, i32
  }
  func.func @transform_5(%arg0: i32) -> (i32, i32) {
    %c0_i32 = arith.constant 0 : i32
    %c0_i32_0 = arith.constant 0 : i32
    return %arg0, %c0_i32 : i32, i32
  }
}

</mosaic_0001>

<llo_original>
// kernel: tpu_custom_call.1
$region0: #{tpu_custom_call.1}
  #allocation0 [shape = 'u32[]', space=smem, size = 0x4, offset = 0x4, fixed_abs, tag = 'smem constant byte address 0x4 - core index']
  #allocation1 [shape = 'u32[144,128]{1,0:T(1,128)}', space=vmem, size = 0x12000, scoped, tag = 'internal scratch']
  %s0 = inlined_call_operand.vmem [shape: f32[16,32], index: 0, kind: input, shape index: {}]
  %s1 = inlined_call_operand.vmem [shape: bf16[32,64], index: 1, kind: input, shape index: {}]
  %s2 = inlined_call_operand.vmem [shape: f32[1,64], index: 2, kind: input, shape index: {}]
  %s3 = inlined_call_operand.vmem [shape: bf16[64,32], index: 3, kind: input, shape index: {}]
  %s4 = inlined_call_operand.vmem [shape: f32[1,32], index: 4, kind: input, shape index: {}]
  %s5 = inlined_call_operand.hbm [shape: f32[16,32], index: 5, kind: output, shape index: {}]
  %s6 = sld [smem:[#allocation0]]
  $region30: #{tpu_custom_call.1} parent=0
    _
  %s8 = ssub.s32 1, %s6
  %s9 = scalar_select 0, %s8, %s6
  $region1: #{tpu_custom_call.1} parent=0
    #allocation2 [shape = 'u8[8192]{0}', space=vmem, size = 0x2000, scoped, tag = 'output window, operand 0, single buffered']
    #allocation3 [shape = 's32[1]{0}', space=sflag, size = 0x4, scoped, tag = 'scoped memory for tpu_custom_call.1']
    %10 = vsyncpa [#allocation3], 0
    // Predicated region
    $region2: #{tpu_custom_call.1} parent=1 // pred_check
      _
    $region3: #{tpu_custom_call.1} parent=1 // pred_check_branch
      %12 = sbr.rel (0) target = $region5
    $region4: #{tpu_custom_call.1} parent=1 // pred_region
      _
    $region5: #{tpu_custom_call.1} parent=1 // pred_fallthru
      _
    // Predicated region
    $region6: #{tpu_custom_call.1} parent=1 // pred_check
      _
    $region7: #{tpu_custom_call.1} parent=1 // pred_check_branch
      %14 = sbr.rel (0) target = $region9
    $region8: #{tpu_custom_call.1} parent=1 // pred_region
      _
    $region9: #{tpu_custom_call.1} parent=1 // pred_fallthru
      _
    // Predicated region
    $region10: #{tpu_custom_call.1} parent=1 // pred_check
      _
    $region11: #{tpu_custom_call.1} parent=1 // pred_check_branch
      %16 = sbr.rel (0) target = $region13
    $region12: #{tpu_custom_call.1} parent=1 // pred_region
      _
    $region13: #{tpu_custom_call.1} parent=1 // pred_fallthru
      _
    // Predicated region
    $region14: #{tpu_custom_call.1} parent=1 // pred_check
      _
    $region15: #{tpu_custom_call.1} parent=1 // pred_check_branch
      %18 = sbr.rel (0) target = $region17
    $region16: #{tpu_custom_call.1} parent=1 // pred_region
      _
    $region17: #{tpu_custom_call.1} parent=1 // pred_fallthru
      _
    // Predicated region
    $region18: #{tpu_custom_call.1} parent=1 // pred_check
      _
    $region19: #{tpu_custom_call.1} parent=1 // pred_check_branch
      %20 = sbr.rel (0) target = $region21
    $region20: #{tpu_custom_call.1} parent=1 // pred_region
      _
    $region21: #{tpu_custom_call.1} parent=1 // pred_fallthru
      _
    %v22 = vld [vmem:[%s0] sm:$0xff]
    %v23 = vld [vmem:[%s0 + $0x8] sm:$0xff]
    %v24 = vpack.c.bf16 %v23, %v22
    %v25 = vld [vmem:[%s1] sm:$0xf]
    %v26 = vld [vmem:[%s1 + $0x4] sm:$0xf]
    %v27 = vld [vmem:[%s1 + $0x8] sm:$0xf]
    %v28 = vld [vmem:[%s1 + $0xc] sm:$0xf]
    %v29 = vld [vmem:[%s2] sm:$0x1]
    %v31 = vlaneseq
    %v32 = vshrl.u32 %v31, 7
    %v33 = vsub.s32 0, %v32
    %v34 = vrot.slane %v29, %v33
    %v40 = vunpack.c.l.b16 %v25
    %v41 = vunpack.c.l.b16 %v26
    %v42 = vunpack.c.l.b16 %v27
    %v43 = vunpack.c.l.b16 %v28
    %v44 = vpack.c.b16 %v41, %v40
    %v45 = vpack.c.b16 %v43, %v42
    %vm48 = vcmask 261120
    %v50 = vsel %vm48, %v24, 0
    %52 = vmatprep.subr.bf16.mxu0 0
    %53 = vmatpush1.bf16.msra.mxu0 %v44
    %54 = vmatprep.subr.bf16.mxu0 0
    %55 = vmatpush1.bf16.msra.mxu0 %v45
    %56 = vmatprep.subr.bf16.mxu0 0
    %57 = vmatpush1.bf16.msra.mxu0 0
    %58 = vmatprep.subr.bf16.mxu0 0
    %59 = vmatpush1.bf16.msra.mxu0 0
    %60 = vmatprep.subr.bf16.mxu0 0
    %61 = vmatpush1.bf16.msra.mxu0 0
    %62 = vmatprep.subr.bf16.mxu0 0
    %63 = vmatpush1.bf16.msra.mxu0 0
    %64 = vmatprep.subr.bf16.mxu0 0
    %65 = vmatpush1.bf16.msra.mxu0 0
    %66 = vmatprep.subr.bf16.mxu0 0
    %67 = vmatpush1.bf16.msra.mxu0 0
    %68 = vmatprep.subr.bf16.mxu0 0
    %69 = vmatpush1.bf16.msra.mxu0 0
    %70 = vmatprep.subr.bf16.mxu0 0
    %71 = vmatpush1.bf16.msra.mxu0 0
    %72 = vmatprep.subr.bf16.mxu0 0
    %73 = vmatpush1.bf16.msra.mxu0 0
    %74 = vmatprep.subr.bf16.mxu0 0
    %75 = vmatpush1.bf16.msra.mxu0 0
    %76 = vmatprep.subr.bf16.mxu0 0
    %77 = vmatpush1.bf16.msra.mxu0 0
    %78 = vmatprep.subr.bf16.mxu0 0
    %79 = vmatpush1.bf16.msra.mxu0 0
    %80 = vmatprep.subr.bf16.mxu0 0
    %81 = vmatpush1.bf16.msra.mxu0 0
    %82 = vmatprep.subr.bf16.mxu0 0
    %83 = vmatpush1.bf16.msra.mxu0 0
    %84 = vmatprep.mubr.bf16.mxu0 0
    %85 = vmatmul.mubr.bf16.gmra.mrb[0].mxu0 %v50
    %v86 = vpop.f32.mrb[0].mxu0
    %v87 = vadd.f32 %v34, %v86
    %v88 = vpop.f32.mrb[0].mxu0
    %v89 = vpop.f32.mrb[0].mxu0
    %v90 = vadd.f32 %v34, %v89
    %v91 = vpop.f32.mrb[0].mxu0
    %92 = vdwg.mxu0
    %v93 = vmul.f32 %v87, %v87
    %v94 = vmul.f32 %v90, %v90
    %v95 = vmul.f32 %v87, %v93
    %v96 = vmul.f32 %v90, %v94
    %v97 = vmul.f32 %v95, 0.044715
    %v98 = vmul.f32 %v96, 0.044715
    %v99 = vadd.f32 %v87, %v97
    %v100 = vadd.f32 %v90, %v98
    %v101 = vmul.f32 %v99, 0.7978846
    %v102 = vmul.f32 %v100, 0.7978846
    %v103 = vtanh.pop %v101
    %v104 = vtanh.pop %v102
    %v105 = vadd.f32 %v103, 1.0
    %v106 = vadd.f32 %v104, 1.0
    %v107 = vmul.f32 %v105, 0.5
    %v108 = vmul.f32 %v106, 0.5
    %v109 = vmul.f32 %v87, %v107
    %v110 = vmul.f32 %v90, %v108
    %v111 = vpack.c.bf16 %v110, %v109
    %v112 = vld [vmem:[%s3] sm:$0xf]
    %v113 = vld [vmem:[%s3 + $0x4] sm:$0xf]
    %v114 = vld [vmem:[%s3 + $0x8] sm:$0xf]
    %v115 = vld [vmem:[%s3 + $0xc] sm:$0xf]
    %v116 = vld [vmem:[%s3 + $0x10] sm:$0xf]
    %v117 = vld [vmem:[%s3 + $0x14] sm:$0xf]
    %v118 = vld [vmem:[%s3 + $0x18] sm:$0xf]
    %v119 = vld [vmem:[%s3 + $0x1c] sm:$0xf]
    %v120 = vld [vmem:[%s4] sm:$0x1]
    %v122 = vlaneseq
    %v123 = vshrl.u32 %v122, 7
    %v124 = vsub.s32 0, %v123
    %v125 = vrot.slane %v120, %v124
    %v135 = vunpack.c.l.b16 %v112
    %v136 = vunpack.c.l.b16 %v113
    %v137 = vunpack.c.l.b16 %v114
    %v138 = vunpack.c.l.b16 %v115
    %v139 = vunpack.c.l.b16 %v116
    %v140 = vunpack.c.l.b16 %v117
    %v141 = vunpack.c.l.b16 %v118
    %v142 = vunpack.c.l.b16 %v119
    %v143 = vpack.c.b16 %v136, %v135
    %v144 = vpack.c.b16 %v138, %v137
    %v145 = vpack.c.b16 %v140, %v139
    %v146 = vpack.c.b16 %v142, %v141
    %vm151 = vcmask 523264
    %v153 = vsel %vm151, %v111, 0
    %155 = vmatprep.subr.bf16.mxu0 0
    %156 = vmatpush1.bf16.msra.mxu0 %v143
    %157 = vmatprep.subr.bf16.mxu0 0
    %158 = vmatpush1.bf16.msra.mxu0 %v144
    %159 = vmatprep.subr.bf16.mxu0 0
    %160 = vmatpush1.bf16.msra.mxu0 %v145
    %161 = vmatprep.subr.bf16.mxu0 0
    %162 = vmatpush1.bf16.msra.mxu0 %v146
    %163 = vmatprep.subr.bf16.mxu0 0
    %164 = vmatpush1.bf16.msra.mxu0 0
    %165 = vmatprep.subr.bf16.mxu0 0
    %166 = vmatpush1.bf16.msra.mxu0 0
    %167 = vmatprep.subr.bf16.mxu0 0
    %168 = vmatpush1.bf16.msra.mxu0 0
    %169 = vmatprep.subr.bf16.mxu0 0
    %170 = vmatpush1.bf16.msra.mxu0 0
    %171 = vmatprep.subr.bf16.mxu0 0
    %172 = vmatpush1.bf16.msra.mxu0 0
    %173 = vmatprep.subr.bf16.mxu0 0
    %174 = vmatpush1.bf16.msra.mxu0 0
    %175 = vmatprep.subr.bf16.mxu0 0
    %176 = vmatpush1.bf16.msra.mxu0 0
    %177 = vmatprep.subr.bf16.mxu0 0
    %178 = vmatpush1.bf16.msra.mxu0 0
    %179 = vmatprep.subr.bf16.mxu0 0
    %180 = vmatpush1.bf16.msra.mxu0 0
    %181 = vmatprep.subr.bf16.mxu0 0
    %182 = vmatpush1.bf16.msra.mxu0 0
    %183 = vmatprep.subr.bf16.mxu0 0
    %184 = vmatpush1.bf16.msra.mxu0 0
    %185 = vmatprep.subr.bf16.mxu0 0
    %186 = vmatpush1.bf16.msra.mxu0 0
    %187 = vmatprep.mubr.bf16.mxu0 0
    %188 = vmatmul.mubr.bf16.gmra.mrb[0].mxu0 %v153
    %v189 = vpop.f32.mrb[0].mxu0
    %v190 = vadd.f32 %v125, %v189
    %v191 = vpop.f32.mrb[0].mxu0
    %v192 = vpop.f32.mrb[0].mxu0
    %v193 = vadd.f32 %v125, %v192
    %v194 = vpop.f32.mrb[0].mxu0
    %195 = vdwg.mxu0
    %196 = vst.msk [vmem:[#allocation2] sm:$0xff] %vm48, %v190
    %197 = vst.msk [vmem:[#allocation2 + $0x8] sm:$0xff] %vm48, %v193
    // Predicated region
    $region22: #{tpu_custom_call.1} parent=1 // pred_check
      _
    $region23: #{tpu_custom_call.1} parent=1 // pred_check_branch
      %199 = sbr.rel (0) target = $region25
    $region24: #{tpu_custom_call.1} parent=1 // pred_region
      %s201 = ssub.s32 256, 256
      %202 = vsyncadd [#allocation3], %s201
      %s203 = sshll.u32 [#allocation2], 4
      %s204 = int_to_ptr.vmem [resolvable:$true] %s203
      %209 = dma.vmem_to_hbm [thread:$0]  %s204, 256, %s5, [#allocation3], 128, 128, 8
    $region25: #{tpu_custom_call.1} parent=1 // pred_fallthru
      _
    // Predicated region
    $region26: #{tpu_custom_call.1} parent=1 // pred_check
      _
    $region27: #{tpu_custom_call.1} parent=1 // pred_check_branch
      %211 = sbr.rel (0) target = $region29
    $region28: #{tpu_custom_call.1} parent=1 // pred_region
      %212 = dma.done [#allocation3], 256
    $region29: #{tpu_custom_call.1} parent=1 // pred_fallthru
      _
    %213 = vsyncpa [#allocation3], 1

</llo_original>
